<compile_context>
chip_gen: v7x
topology: tpu7x:2x2x1
jax: 0.10.0
libtpu: 0.0.40
codegen_flags: <defaults>
</compile_context>

<pallas_src>
import functools

import jax
import jax.numpy as jnp
from jax.experimental import pallas as pl
from jax.experimental.pallas import tpu as pltpu


def _round_up(n, m):
    return ((n + m - 1) // m) * m


# Per-core VMEM working-set target for tile sizing (conservative: fits every
# chip generation, incl. v7x's 64 MiB/core, with room for compiler scratch).
_VMEM_TILE_BUDGET = 24 << 20
_VMEM_LIMIT_CAP = 48 << 20
_VMEM_LIMIT_FLOOR = 32 << 20


def _vmem_bytes(tb, F, K):
    """Rough VMEM footprint for one grid step (padded-to-tile, double-buffered)."""
    fl = _round_up(F, 128)          # x lane padding inside VMEM
    kl = _round_up(K, 128)          # out / weight lane padding inside VMEM
    fs = _round_up(F, 8)
    x_buf = 2 * tb * fl * 4         # x tile, double-buffered
    o_buf = 2 * tb * kl * 4         # out tile, double-buffered
    w_buf = 2 * 2 * fs * kl * 4     # W1 + W2 slabs (default double-buffered)
    b_buf = 2 * 8 * kl * 4          # bias
    tmp = 2 * tb * max(fl, kl) * 4  # in-kernel temporaries (x*x, f32 exponent)
    return x_buf + o_buf + w_buf + b_buf + tmp


def gmm_kernel(x_ref, w1_ref, w2_ref, bias_ref, out_ref, *, precision):
    x = x_ref[...]                  # (TB, F)  f32
    dot_kwargs = dict(preferred_element_type=jnp.float32)
    if precision is not None:       # explicit MXU precision knob (see header)
        dot_kwargs["precision"] = precision

    # exponent[b, k] = sum_f -0.5*(x-mu)^2/sigma + log(const_k)
    e = jnp.dot(x * x, w1_ref[...], **dot_kwargs)    # MXU, W1 rows: -0.5/sigma
    e = e + jnp.dot(x, w2_ref[...], **dot_kwargs)    # MXU, W2 rows: mu/sigma
    e = e + bias_ref[...]                            # VPU broadcast add

    # probs = clamp(const * exp(exponent'), 0, 1); exp >= 0 so upper clamp only.
    out_ref[...] = jnp.minimum(jnp.exp(e), 1.0)      # EUP + VPU


@functools.partial(jax.jit, static_argnames=("tb_max", "precision"))
def gmm_forward(x, mu, sigma, *, tb_max=2048, precision=None):
    """Responsibilities (B, K) for input x (B, F), params mu/sigma (K, F)."""
    B, F = x.shape
    K, _ = mu.shape
    x = x.astype(jnp.float32)
    mu = mu.astype(jnp.float32)
    sigma = sigma.astype(jnp.float32)   # must be > 0 (module clamps to >= 0.01)

    # ---- Hoist all parameter-only math out of the kernel (runs once).
    inv_sigma = 1.0 / sigma                                             # (K, F)
    w1 = (-0.5 * inv_sigma).T                                           # (F, K)
    w2 = (mu * inv_sigma).T                                             # (F, K)
    log_const = -0.5 * jnp.log(2.0 * jnp.pi * jnp.sum(sigma, -1))       # (K,)
    bias = (log_const - 0.5 * jnp.sum(mu * mu * inv_sigma, -1))[None, :]  # (1, K)

    # ---- Batch tile: multiple of 8 (sublane), sized against the VMEM budget.
    #      No padding of x: the last partial B tile is a masked boundary block.
    if B <= 8:
        TB = B                                # block dim == full array dim
    else:
        TB = min(tb_max, (B // 8) * 8)
        while TB > 8 and _vmem_bytes(TB, F, K) > _VMEM_TILE_BUDGET:
            TB = max(8, ((TB // 2) // 8) * 8)
    grid = (pl.cdiv(B, TB),)

    # ---- VMEM limit: actual requirement + headroom, capped well below v7x's 64 MiB.
    vmem_limit = int(min(_VMEM_LIMIT_CAP,
                         max(_VMEM_LIMIT_FLOOR, 2 * _vmem_bytes(TB, F, K))))

    cost = pl.CostEstimate(
        flops=4 * B * F * K,                 # two (B,F)x(F,K) matmuls
        transcendentals=B * K,               # exp
        bytes_accessed=4 * (B * F + B * K + 2 * F * K + K),
    )

    out = pl.pallas_call(
        functools.partial(gmm_kernel, precision=precision),
        out_shape=jax.ShapeDtypeStruct((B, K), jnp.float32),
        grid_spec=pltpu.PrefetchScalarGridSpec(
            num_scalar_prefetch=0,
            grid=grid,
            in_specs=[
                # x tile: (TB, F) -- F equals full array dim, no lane padding,
                # pipelined over the batch grid.
                pl.BlockSpec((TB, F), lambda i: (i, 0)),
                # Grid-invariant weights/bias: constant index_map -> fetched once.
                pl.BlockSpec((F, K), lambda i: (0, 0)),
                pl.BlockSpec((F, K), lambda i: (0, 0)),
                pl.BlockSpec((1, K), lambda i: (0, 0)),
            ],
            # Un-padded output: (TB, K), lane dim == full array dim (masked vst);
            # avoids 128/K-inflated writeback and the post-kernel slice.
            out_specs=pl.BlockSpec((TB, K), lambda i: (i, 0)),
        ),
        compiler_params=pltpu.CompilerParams(
            dimension_semantics=("parallel",),   # megacore-shard batch tiles
            vmem_limit_bytes=vmem_limit,
        ),
        cost_estimate=cost,
    )(x, w1, w2, bias)

    return out


def gmm_forward_ref(x, mu, sigma):
    """Pure-JAX reference mirroring the PyTorch broadcast formulation."""
    xb = x[:, None, :]            # (B, 1, F)
    mub = mu[None, :, :]          # (1, K, F)
    sb = sigma[None, :, :]        # (1, K, F)
    const = 1.0 / jnp.sqrt(2.0 * jnp.pi * sb.sum(-1))                 # (1, K)
    exp_term = jnp.exp((-0.5 * (xb - mub) ** 2 / sb).sum(-1))         # (B, K)
    return jnp.clip(const * exp_term, 0.0, 1.0)


if __name__ == "__main__":
    # Module __init__: mu = randn(n_clusters, n_features), sigma = ones(...)
    n_clusters = 4
    n_features = 32
    batch = 8

    key = jax.random.PRNGKey(0)
    kx, kmu, kx2 = jax.random.split(key, 3)
    x = jax.random.normal(kx, (batch, n_features), dtype=jnp.float32)
    mu = jax.random.normal(kmu, (n_clusters, n_features), dtype=jnp.float32)
    sigma = jnp.ones((n_clusters, n_features), dtype=jnp.float32)

    probs = gmm_forward(x, mu, sigma)
    jax.block_until_ready(probs)
    ref = gmm_forward_ref(x, mu, sigma)
    assert probs.shape == (batch, n_clusters)
    assert jnp.allclose(probs, ref, atol=1e-5, rtol=1e-5), "mismatch vs reference"

    # Boundary-block check: B not a multiple of the 8-row tile granularity,
    # so the last grid step is a partial (masked) block.
    x2 = jax.random.normal(kx2, (batch + 3, n_features), dtype=jnp.float32)
    probs2 = gmm_forward(x2, mu, sigma)
    jax.block_until_ready(probs2)
    ref2 = gmm_forward_ref(x2, mu, sigma)
    assert probs2.shape == (batch + 3, n_clusters)
    assert jnp.allclose(probs2, ref2, atol=1e-5, rtol=1e-5), "boundary-tile mismatch"

    print("KERNEL_OK")
</pallas_src>

<mosaic_0001>
module attributes {stable_mosaic.version = 11 : i64} {
  func.func @gmm_kernel(%arg0: i32, %arg1: memref<8x32xf32, #tpu.memory_space<vmem>>, %arg2: memref<32x4xf32, #tpu.memory_space<vmem>>, %arg3: memref<32x4xf32, #tpu.memory_space<vmem>>, %arg4: memref<1x4xf32, #tpu.memory_space<vmem>>, %arg5: memref<8x4xf32, #tpu.memory_space<vmem>>) attributes {dimension_semantics = [#tpu.dimension_semantics<parallel>], iteration_bounds = array<i64: 1>, scalar_prefetch = 0 : i64, scratch_operands = 0 : i64, tpu.core_type = #tpu.core_type<tc>, window_params = [{transform_indices = @transform_0, window_bounds = array<i64: 8, 32>}, {pipeline_mode = #tpu.pipeline_mode<synchronous>, transform_indices = @transform_1, window_bounds = array<i64: 32, 4>}, {pipeline_mode = #tpu.pipeline_mode<synchronous>, transform_indices = @transform_2, window_bounds = array<i64: 32, 4>}, {pipeline_mode = #tpu.pipeline_mode<synchronous>, transform_indices = @transform_3, window_bounds = array<i64: 1, 4>}, {transform_indices = @transform_4, window_bounds = array<i64: 8, 4>}]} {
    %c0 = arith.constant 0 : index
    %c0_0 = arith.constant 0 : index
    %0 = vector.load %arg1[%c0, %c0_0] : memref<8x32xf32, #tpu.memory_space<vmem>>, vector<8x32xf32>
    %1 = arith.mulf %0, %0 : vector<8x32xf32>
    %c0_1 = arith.constant 0 : index
    %c0_2 = arith.constant 0 : index
    %2 = vector.load %arg2[%c0_1, %c0_2] : memref<32x4xf32, #tpu.memory_space<vmem>>, vector<32x4xf32>
    %cst = arith.constant dense<0.000000e+00> : vector<8x4xf32>
    %3 = tpu.matmul %1, %2, %cst {dimension_numbers = #tpu.dot_dimension_numbers<[1], [0], [0], [1], [0, 0, 1, 1], [], []>} : vector<8x32xf32>, vector<32x4xf32>, vector<8x4xf32> -> vector<8x4xf32>
    %c0_3 = arith.constant 0 : index
    %c0_4 = arith.constant 0 : index
    %4 = vector.load %arg3[%c0_3, %c0_4] : memref<32x4xf32, #tpu.memory_space<vmem>>, vector<32x4xf32>
    %cst_5 = arith.constant dense<0.000000e+00> : vector<8x4xf32>
    %5 = tpu.matmul %0, %4, %cst_5 {dimension_numbers = #tpu.dot_dimension_numbers<[1], [0], [0], [1], [0, 0, 1, 1], [], []>} : vector<8x32xf32>, vector<32x4xf32>, vector<8x4xf32> -> vector<8x4xf32>
    %6 = arith.addf %3, %5 : vector<8x4xf32>
    %c0_6 = arith.constant 0 : index
    %c0_7 = arith.constant 0 : index
    %7 = vector.load %arg4[%c0_6, %c0_7] : memref<1x4xf32, #tpu.memory_space<vmem>>, vector<1x4xf32>
    %8 = vector.broadcast %7 : vector<1x4xf32> to vector<8x4xf32>
    %9 = arith.addf %6, %8 : vector<8x4xf32>
    %10 = math.exp %9 : vector<8x4xf32>
    %cst_8 = arith.constant 1.000000e+00 : f32
    %11 = vector.broadcast %cst_8 : f32 to vector<8x4xf32>
    %12 = arith.minimumf %10, %11 : vector<8x4xf32>
    %c0_9 = arith.constant 0 : index
    %c0_10 = arith.constant 0 : index
    %13 = vector.load %arg5[%c0_9, %c0_10] : memref<8x4xf32, #tpu.memory_space<vmem>>, vector<8x4xf32>
    tpu.vector_store %arg5[%c0_9, %c0_10], %12 {strides = array<i32>} : memref<8x4xf32, #tpu.memory_space<vmem>>, vector<8x4xf32>,
    return
  }
  func.func @transform_0(%arg0: i32) -> (i32, i32) {
    %c0_i32 = arith.constant 0 : i32
    %c0_i32_0 = arith.constant 0 : i32
    return %arg0, %c0_i32 : i32, i32
  }
  func.func @transform_1(%arg0: i32) -> (i32, i32) {
    %c0_i32 = arith.constant 0 : i32
    %c0_i32_0 = arith.constant 0 : i32
    %c0_i32_1 = arith.constant 0 : i32
    return %c0_i32, %c0_i32_0 : i32, i32
  }
  func.func @transform_2(%arg0: i32) -> (i32, i32) {
    %c0_i32 = arith.constant 0 : i32
    %c0_i32_0 = arith.constant 0 : i32
    %c0_i32_1 = arith.constant 0 : i32
    return %c0_i32, %c0_i32_0 : i32, i32
  }
  func.func @transform_3(%arg0: i32) -> (i32, i32) {
    %c0_i32 = arith.constant 0 : i32
    %c0_i32_0 = arith.constant 0 : i32
    %c0_i32_1 = arith.constant 0 : i32
    return %c0_i32, %c0_i32_0 : i32, i32
  }
  func.func @transform_4(%arg0: i32) -> (i32, i32) {
    %c0_i32 = arith.constant 0 : i32
    %c0_i32_0 = arith.constant 0 : i32
    return %arg0, %c0_i32 : i32, i32
  }
}

</mosaic_0001>

<llo_original>
// kernel: gmm_forward.1
$region0: #{gmm_forward.1}
  #allocation0 [shape = 'u32[]', space=smem, size = 0x4, offset = 0x4, fixed_abs, tag = 'smem constant byte address 0x4 - core index']
  #allocation1 [shape = 'u32[144,128]{1,0:T(1,128)}', space=vmem, size = 0x12000, scoped, tag = 'internal scratch']
  %s0 = inlined_call_operand.vmem [shape: f32[8,32], index: 0, kind: input, shape index: {}]
  %s1 = inlined_call_operand.vmem [shape: f32[32,4], index: 1, kind: input, shape index: {}]
  %s2 = inlined_call_operand.vmem [shape: f32[32,4], index: 2, kind: input, shape index: {}]
  %s3 = inlined_call_operand.vmem [shape: f32[1,4], index: 3, kind: input, shape index: {}]
  %s4 = inlined_call_operand.vmem [shape: f32[8,4], index: 4, kind: output, shape index: {}]
  %s5 = sld [smem:[#allocation0]]
  $region26: #{gmm_forward.1} parent=0
    _
  %s7 = ssub.s32 1, %s5
  %s8 = scalar_select 0, %s7, %s5
  // Predicated region
  $region2: #{gmm_forward.1} parent=0 // pred_check
    _
  $region3: #{gmm_forward.1} parent=0 // pred_check_branch
    %10 = sbr.rel (0) target = $region5
  $region4: #{gmm_forward.1} parent=0 // pred_region
    _
  $region5: #{gmm_forward.1} parent=0 // pred_fallthru
    _
  // Predicated region
  $region6: #{gmm_forward.1} parent=0 // pred_check
    _
  $region7: #{gmm_forward.1} parent=0 // pred_check_branch
    %12 = sbr.rel (0) target = $region9
  $region8: #{gmm_forward.1} parent=0 // pred_region
    _
  $region9: #{gmm_forward.1} parent=0 // pred_fallthru
    _
  // Predicated region
  $region10: #{gmm_forward.1} parent=0 // pred_check
    _
  $region11: #{gmm_forward.1} parent=0 // pred_check_branch
    %14 = sbr.rel (0) target = $region13
  $region12: #{gmm_forward.1} parent=0 // pred_region
    _
  $region13: #{gmm_forward.1} parent=0 // pred_fallthru
    _
  // Predicated region
  $region14: #{gmm_forward.1} parent=0 // pred_check
    _
  $region15: #{gmm_forward.1} parent=0 // pred_check_branch
    %16 = sbr.rel (0) target = $region17
  $region16: #{gmm_forward.1} parent=0 // pred_region
    _
  $region17: #{gmm_forward.1} parent=0 // pred_fallthru
    _
  %v17 = vld [vmem:[%s0] sm:$0xff]
  %v18 = vmul.f32 %v17, %v17
  %v19 = vld [vmem:[%s1] sm:$0xff]
  %v20 = vld [vmem:[%s1 + $0x8] sm:$0xff]
  %v21 = vld [vmem:[%s1 + $0x10] sm:$0xff]
  %v22 = vld [vmem:[%s1 + $0x18] sm:$0xff]
  %v23 = vld [vmem:[%s2] sm:$0xff]
  %v24 = vld [vmem:[%s2 + $0x8] sm:$0xff]
  %v25 = vld [vmem:[%s2 + $0x10] sm:$0xff]
  %v26 = vld [vmem:[%s2 + $0x18] sm:$0xff]
  %vm27 = vcmask 261120
  %v29 = vsel %vm27, %v17, 0
  %31 = vmatprep.subr.mxu0 0.0
  %32 = vmatpush1.msra.mxu0 %v23
  %33 = vmatprep.subr.mxu0 0.0
  %34 = vmatpush1.msra.mxu0 %v24
  %35 = vmatprep.subr.mxu0 0.0
  %36 = vmatpush1.msra.mxu0 %v25
  %37 = vmatprep.subr.mxu0 0.0
  %38 = vmatpush1.msra.mxu0 %v26
  %39 = vmatprep.subr.mxu0 0.0
  %40 = vmatpush1.msra.mxu0 0.0
  %41 = vmatprep.subr.mxu0 0.0
  %42 = vmatpush1.msra.mxu0 0.0
  %43 = vmatprep.subr.mxu0 0.0
  %44 = vmatpush1.msra.mxu0 0.0
  %45 = vmatprep.subr.mxu0 0.0
  %46 = vmatpush1.msra.mxu0 0.0
  %47 = vmatprep.subr.mxu0 0.0
  %48 = vmatpush1.msra.mxu0 0.0
  %49 = vmatprep.subr.mxu0 0.0
  %50 = vmatpush1.msra.mxu0 0.0
  %51 = vmatprep.subr.mxu0 0.0
  %52 = vmatpush1.msra.mxu0 0.0
  %53 = vmatprep.subr.mxu0 0.0
  %54 = vmatpush1.msra.mxu0 0.0
  %55 = vmatprep.subr.mxu0 0.0
  %56 = vmatpush1.msra.mxu0 0.0
  %57 = vmatprep.subr.mxu0 0.0
  %58 = vmatpush1.msra.mxu0 0.0
  %59 = vmatprep.subr.mxu0 0.0
  %60 = vmatpush1.msra.mxu0 0.0
  %61 = vmatprep.subr.mxu0 0.0
  %62 = vmatpush1.msra.mxu0 0.0
  %63 = vmatprep.subr.mxu0 0.0
  %64 = vmatpush1.msra.mxu0 0.0
  %65 = vmatprep.subr.mxu0 0.0
  %66 = vmatpush1.msra.mxu0 0.0
  %67 = vmatprep.subr.mxu0 0.0
  %68 = vmatpush1.msra.mxu0 0.0
  %69 = vmatprep.subr.mxu0 0.0
  %70 = vmatpush1.msra.mxu0 0.0
  %71 = vmatprep.subr.mxu0 0.0
  %72 = vmatpush1.msra.mxu0 0.0
  %73 = vmatprep.subr.mxu0 0.0
  %74 = vmatpush1.msra.mxu0 0.0
  %75 = vmatprep.subr.mxu0 0.0
  %76 = vmatpush1.msra.mxu0 0.0
  %77 = vmatprep.subr.mxu0 0.0
  %78 = vmatpush1.msra.mxu0 0.0
  %79 = vmatprep.subr.mxu0 0.0
  %80 = vmatpush1.msra.mxu0 0.0
  %81 = vmatprep.subr.mxu0 0.0
  %82 = vmatpush1.msra.mxu0 0.0
  %83 = vmatprep.subr.mxu0 0.0
  %84 = vmatpush1.msra.mxu0 0.0
  %85 = vmatprep.subr.mxu0 0.0
  %86 = vmatpush1.msra.mxu0 0.0
  %87 = vmatprep.subr.mxu0 0.0
  %88 = vmatpush1.msra.mxu0 0.0
  %89 = vmatprep.subr.mxu0 0.0
  %90 = vmatpush1.msra.mxu0 0.0
  %91 = vmatprep.subr.mxu0 0.0
  %92 = vmatpush1.msra.mxu0 0.0
  %93 = vmatprep.subr.mxu0 0.0
  %94 = vmatpush1.msra.mxu0 0.0
  %95 = vmatprep.mubr.f32.mxu0 0.0
  %96 = vmatmul.mubr.f32.gmra.mrb[0].mxu0 %v29
  %v97 = vpop.f32.mrb[0].mxu0
  %v98 = vadd.f32 0.0, %v97
  %v99 = vpop.f32.mrb[0].mxu0
  %100 = vdwg.mxu0
  %v102 = vsel %vm27, %v18, 0
  %104 = vmatprep.subr.mxu0 0.0
  %105 = vmatpush1.msra.mxu0 %v19
  %106 = vmatprep.subr.mxu0 0.0
  %107 = vmatpush1.msra.mxu0 %v20
  %108 = vmatprep.subr.mxu0 0.0
  %109 = vmatpush1.msra.mxu0 %v21
  %110 = vmatprep.subr.mxu0 0.0
  %111 = vmatpush1.msra.mxu0 %v22
  %112 = vmatprep.subr.mxu0 0.0
  %113 = vmatpush1.msra.mxu0 0.0
  %114 = vmatprep.subr.mxu0 0.0
  %115 = vmatpush1.msra.mxu0 0.0
  %116 = vmatprep.subr.mxu0 0.0
  %117 = vmatpush1.msra.mxu0 0.0
  %118 = vmatprep.subr.mxu0 0.0
  %119 = vmatpush1.msra.mxu0 0.0
  %120 = vmatprep.subr.mxu0 0.0
  %121 = vmatpush1.msra.mxu0 0.0
  %122 = vmatprep.subr.mxu0 0.0
  %123 = vmatpush1.msra.mxu0 0.0
  %124 = vmatprep.subr.mxu0 0.0
  %125 = vmatpush1.msra.mxu0 0.0
  %126 = vmatprep.subr.mxu0 0.0
  %127 = vmatpush1.msra.mxu0 0.0
  %128 = vmatprep.subr.mxu0 0.0
  %129 = vmatpush1.msra.mxu0 0.0
  %130 = vmatprep.subr.mxu0 0.0
  %131 = vmatpush1.msra.mxu0 0.0
  %132 = vmatprep.subr.mxu0 0.0
  %133 = vmatpush1.msra.mxu0 0.0
  %134 = vmatprep.subr.mxu0 0.0
  %135 = vmatpush1.msra.mxu0 0.0
  %136 = vmatprep.subr.mxu0 0.0
  %137 = vmatpush1.msra.mxu0 0.0
  %138 = vmatprep.subr.mxu0 0.0
  %139 = vmatpush1.msra.mxu0 0.0
  %140 = vmatprep.subr.mxu0 0.0
  %141 = vmatpush1.msra.mxu0 0.0
  %142 = vmatprep.subr.mxu0 0.0
  %143 = vmatpush1.msra.mxu0 0.0
  %144 = vmatprep.subr.mxu0 0.0
  %145 = vmatpush1.msra.mxu0 0.0
  %146 = vmatprep.subr.mxu0 0.0
  %147 = vmatpush1.msra.mxu0 0.0
  %148 = vmatprep.subr.mxu0 0.0
  %149 = vmatpush1.msra.mxu0 0.0
  %150 = vmatprep.subr.mxu0 0.0
  %151 = vmatpush1.msra.mxu0 0.0
  %152 = vmatprep.subr.mxu0 0.0
  %153 = vmatpush1.msra.mxu0 0.0
  %154 = vmatprep.subr.mxu0 0.0
  %155 = vmatpush1.msra.mxu0 0.0
  %156 = vmatprep.subr.mxu0 0.0
  %157 = vmatpush1.msra.mxu0 0.0
  %158 = vmatprep.subr.mxu0 0.0
  %159 = vmatpush1.msra.mxu0 0.0
  %160 = vmatprep.subr.mxu0 0.0
  %161 = vmatpush1.msra.mxu0 0.0
  %162 = vmatprep.subr.mxu0 0.0
  %163 = vmatpush1.msra.mxu0 0.0
  %164 = vmatprep.subr.mxu0 0.0
  %165 = vmatpush1.msra.mxu0 0.0
  %166 = vmatprep.subr.mxu0 0.0
  %167 = vmatpush1.msra.mxu0 0.0
  %168 = vmatprep.mubr.f32.mxu0 0.0
  %169 = vmatmul.mubr.f32.gmra.mrb[0].mxu0 %v102
  %v170 = vpop.f32.mrb[0].mxu0
  %v171 = vadd.f32 %v98, %v170
  %v172 = vpop.f32.mrb[0].mxu0
  %173 = vdwg.mxu0
  %v174 = vld [vmem:[%s3] sm:$0x1]
  %v176 = vlaneseq
  %v177 = vshrl.u32 %v176, 7
  %v178 = vsub.s32 0, %v177
  %v179 = vrot.slane %v174, %v178
  %v181 = vadd.f32 %v171, %v179
  %v182 = vmul.f32 %v181, 1.442695
  %v183 = vpow.pop %v182
  %v184 = vmin.f32 %v183, 1.0
  %vm185 = vcmask 31744
  %186 = vst.msk [vmem:[%s4] sm:$0xff] %vm185, %v184
  // Predicated region
  $region18: #{gmm_forward.1} parent=0 // pred_check
    _
  $region19: #{gmm_forward.1} parent=0 // pred_check_branch
    %188 = sbr.rel (0) target = $region21
  $region20: #{gmm_forward.1} parent=0 // pred_region
    _
  $region21: #{gmm_forward.1} parent=0 // pred_fallthru
    _
  // Predicated region
  $region22: #{gmm_forward.1} parent=0 // pred_check
    _
  $region23: #{gmm_forward.1} parent=0 // pred_check_branch
    %190 = sbr.rel (0) target = $region25
  $region24: #{gmm_forward.1} parent=0 // pred_region
    _
  $region25: #{gmm_forward.1} parent=0 // pred_fallthru
    _

</llo_original>
